<compile_context>
chip_gen: v7x
topology: tpu7x:2x2x1
jax: 0.10.0
libtpu: 0.0.40
codegen_flags: <defaults>
</compile_context>

<pallas_src>
import functools

import jax
import jax.numpy as jnp
from jax.experimental import pallas as pl
from jax.experimental.pallas import tpu as pltpu


def _clamp_kernel(x_ref, o_ref, *, min_val, max_val):
    # Elementwise clamp on the whole VMEM tile (VPU work, native dtype).
    x = x_ref[...]
    lo = jnp.asarray(min_val, dtype=x.dtype)
    hi = jnp.asarray(max_val, dtype=x.dtype)
    o_ref[...] = jnp.minimum(jnp.maximum(x, lo), hi)


def _hw_params():
    """Best-effort (VMEM capacity, TensorCore count) query, with safe fallbacks."""
    vmem_cap = 128 * 1024 * 1024
    num_tc = 1
    try:
        info = pltpu.get_tpu_info()
        vmem_cap = int(getattr(info, "vmem_capacity_bytes", vmem_cap) or vmem_cap)
        for name in ("num_cores", "core_count", "num_tensorcores", "tensorcore_count"):
            v = getattr(info, name, None)
            if v:
                num_tc = int(v)
                break
        else:
            # Heuristic: 64 MiB per-TC VMEM => v7x-class chip with 2 TCs.
            num_tc = 2 if vmem_cap <= 64 * 1024 * 1024 else 1
    except Exception:
        pass
    return vmem_cap, num_tc


def _clamp_2d(x2d, min_val, max_val, *, tile_rows, num_steps, vmem_limit):
    rows, lane = x2d.shape
    itemsize = x2d.dtype.itemsize
    kernel = functools.partial(_clamp_kernel, min_val=min_val, max_val=max_val)
    return pl.pallas_call(
        kernel,
        out_shape=jax.ShapeDtypeStruct((rows, lane), x2d.dtype),
        grid_spec=pltpu.PrefetchScalarGridSpec(
            num_scalar_prefetch=0,
            grid=(num_steps,),
            in_specs=[pl.BlockSpec((tile_rows, lane), lambda i: (i, 0))],
            out_specs=pl.BlockSpec((tile_rows, lane), lambda i: (i, 0)),
        ),
        compiler_params=pltpu.CompilerParams(
            dimension_semantics=("parallel",),
            vmem_limit_bytes=int(vmem_limit),
        ),
        cost_estimate=pl.CostEstimate(
            flops=2 * rows * lane,
            transcendentals=0,
            bytes_accessed=2 * rows * lane * itemsize,
        ),
    )(x2d)


def clamp_pallas(x, min_val, max_val):
    """Clamp `x` (any shape/dtype) between min_val and max_val (torch.clamp)."""
    orig_shape = x.shape
    dtype = x.dtype
    n = x.size
    itemsize = jnp.dtype(dtype).itemsize

    # Latency-bound sizes: XLA's fused clip beats pallas_call fixed cost.
    if n == 0 or n * itemsize < 256 * 1024:
        lo = jnp.asarray(min_val, dtype)
        hi = jnp.asarray(max_val, dtype)
        return jnp.clip(x, lo, hi)

    # Sublane packing: f32 -> 8 rows, bf16/f16 -> 16, int8/fp8 -> 32.
    sublane = {4: 8, 2: 16, 1: 32}.get(itemsize, 8)

    # Generation-aware block sizing.
    vmem_cap, num_tc = _hw_params()
    if vmem_cap <= 64 * 1024 * 1024:
        # v7x-class: 64 MiB per-TC VMEM -> cap blocks at 8 MiB
        # (2x(in+out) double buffering = 32 MiB live).
        target_block_bytes = 8 * 1024 * 1024
    else:
        # v5e/v6e: 128 MiB VMEM -> 16 MiB blocks amortize per-step overhead.
        target_block_bytes = 16 * 1024 * 1024
    vmem_limit = min(4 * target_block_bytes + 16 * 1024 * 1024, (vmem_cap * 3) // 4)

    # Widest lane-dense last dim that divides n exactly (fast path: no extra
    # HBM passes outside the kernel).
    lane = None
    for cand in (2048, 1024, 512, 256, 128):
        if n % cand == 0:
            lane = cand
            break

    flat = x.reshape(-1)
    if lane is None:
        # Ragged count: kernel on the largest 128-divisible prefix, tiny
        # (<128 element) tail handled by jnp.clip, then stitched.
        lane = 128
        n_main = (n // lane) * lane
        main = flat[:n_main]
        tail = flat[n_main:]
    else:
        n_main = n
        main = flat
        tail = None

    rows = n_main // lane
    x2d = main.reshape(rows, lane)

    tile_rows = max(
        sublane, (target_block_bytes // (lane * itemsize)) // sublane * sublane
    )

    if rows <= tile_rows:
        # Single block covering the whole slab (full-extent blocks are always
        # legal even when not (8,128)-aligned).
        tile_rows = rows
        num_steps = 1
    else:
        if num_tc >= 2:
            # Multi-TC chips only: keep >= 2 steps per TensorCore so megacore
            # sharding has work for every core.  On single-TC v5e/v6e the grid
            # is a serial loop, so shrinking tiles only adds per-step overhead.
            min_steps = 2 * num_tc
            cap = ((rows // min_steps) // sublane) * sublane
            if cap >= sublane:
                tile_rows = min(tile_rows, cap)
        num_steps = pl.cdiv(rows, tile_rows)
        if num_tc >= 2 and num_steps > 1 and num_steps % 2 == 1:
            # Prefer an even step count for balanced split across the 2 TCs.
            num_steps += 1
            tile_rows = max(
                sublane, pl.cdiv(pl.cdiv(rows, num_steps), sublane) * sublane
            )
            num_steps = pl.cdiv(rows, tile_rows)

    out2d = _clamp_2d(
        x2d,
        min_val,
        max_val,
        tile_rows=tile_rows,
        num_steps=num_steps,
        vmem_limit=vmem_limit,
    )

    out_flat = out2d.reshape(-1)
    if tail is not None:
        lo = jnp.asarray(min_val, dtype)
        hi = jnp.asarray(max_val, dtype)
        out_flat = jnp.concatenate([out_flat, jnp.clip(tail, lo, hi)])
    return out_flat.reshape(orig_shape)


if __name__ == "__main__":
    # Module parameters (from __init__ signature: min, max).
    clamp_min = -0.5
    clamp_max = 0.5

    key = jax.random.PRNGKey(0)
    k0, k1, k2 = jax.random.split(key, 3)

    # 1) Small NCHW input consistent with the module (takes the fused-clip
    #    fast path for latency-bound sizes).
    x_small = jax.random.normal(k0, (2, 4, 16, 16), dtype=jnp.float32)
    # 2) Larger lane-friendly input that exercises the Pallas streaming path.
    x_big = jax.random.normal(k1, (2, 8, 128, 128), dtype=jnp.float32)
    # 3) Ragged element count (not a multiple of 128): prefix kernel + tail.
    x_ragged = jax.random.normal(k2, (3, 7, 65, 129), dtype=jnp.float32)

    for x in (x_small, x_big, x_ragged):
        ref = jnp.clip(x, clamp_min, clamp_max)  # torch.clamp semantics (NaN-prop incl.)
        out = clamp_pallas(x, clamp_min, clamp_max)
        out = jax.block_until_ready(out)
        assert out.shape == ref.shape and out.dtype == ref.dtype
        assert jnp.allclose(out, ref), "mismatch vs reference clamp"

    print("KERNEL_OK")
</pallas_src>

<mosaic_0001>
module attributes {stable_mosaic.version = 11 : i64} {
  func.func @_clamp_kernel(%arg0: i32, %arg1: memref<128x2048xf32, #tpu.memory_space<vmem>>, %arg2: memref<128x2048xf32, #tpu.memory_space<vmem>>) attributes {dimension_semantics = [#tpu.dimension_semantics<parallel>], iteration_bounds = array<i64: 1>, scalar_prefetch = 0 : i64, scratch_operands = 0 : i64, tpu.core_type = #tpu.core_type<tc>, window_params = [{transform_indices = @transform_0, window_bounds = array<i64: 128, 2048>}, {transform_indices = @transform_1, window_bounds = array<i64: 128, 2048>}]} {
    %c0 = arith.constant 0 : index
    %c0_0 = arith.constant 0 : index
    %0 = vector.load %arg1[%c0, %c0_0] : memref<128x2048xf32, #tpu.memory_space<vmem>>, vector<128x2048xf32>
    %cst = arith.constant -5.000000e-01 : f32
    %1 = vector.broadcast %cst : f32 to vector<128x2048xf32>
    %2 = arith.maximumf %0, %1 : vector<128x2048xf32>
    %cst_1 = arith.constant 5.000000e-01 : f32
    %3 = vector.broadcast %cst_1 : f32 to vector<128x2048xf32>
    %4 = arith.minimumf %2, %3 : vector<128x2048xf32>
    %c0_2 = arith.constant 0 : index
    %c0_3 = arith.constant 0 : index
    %5 = vector.load %arg2[%c0_2, %c0_3] : memref<128x2048xf32, #tpu.memory_space<vmem>>, vector<128x2048xf32>
    tpu.vector_store %arg2[%c0_2, %c0_3], %4 {strides = array<i32>} : memref<128x2048xf32, #tpu.memory_space<vmem>>, vector<128x2048xf32>,
    return
  }
  func.func @transform_0(%arg0: i32) -> (i32, i32) {
    %c0_i32 = arith.constant 0 : i32
    %c0_i32_0 = arith.constant 0 : i32
    return %arg0, %c0_i32 : i32, i32
  }
  func.func @transform_1(%arg0: i32) -> (i32, i32) {
    %c0_i32 = arith.constant 0 : i32
    %c0_i32_0 = arith.constant 0 : i32
    return %arg0, %c0_i32 : i32, i32
  }
}

</mosaic_0001>

<llo_original>
// kernel: tpu_custom_call.1
$region0: #{tpu_custom_call.1}
  #allocation0 [shape = 'u32[]', space=smem, size = 0x4, offset = 0x4, fixed_abs, tag = 'smem constant byte address 0x4 - core index']
  #allocation1 [shape = 'u32[144,128]{1,0:T(1,128)}', space=vmem, size = 0x12000, scoped, tag = 'internal scratch']
  %s0 = inlined_call_operand.hbm [shape: f32[128,2048], index: 0, kind: input, shape index: {}]
  %s1 = inlined_call_operand.hbm [shape: f32[128,2048], index: 1, kind: output, shape index: {}]
  %s2 = sld [smem:[#allocation0]]
  $region18: #{tpu_custom_call.1} parent=0
    _
  %s4 = ssub.s32 1, %s2
  %s5 = scalar_select 0, %s4, %s2
  $region1: #{tpu_custom_call.1} parent=0
    #allocation2 [shape = 'u8[1048576]{0}', space=vmem, size = 0x100000, scoped, tag = 'input window, operand 0, single buffered']
    #allocation3 [shape = 's32[1]{0}', space=sflag, size = 0x4, scoped, tag = 'scoped memory for tpu_custom_call.1']
    #allocation4 [shape = 's32[1]{0}', space=sflag, size = 0x4, scoped, tag = 'scoped memory for tpu_custom_call.1']
    #allocation5 [shape = 'u8[1048576]{0}', space=vmem, size = 0x100000, scoped, tag = 'output window, operand 0, single buffered']
    %6 = vsyncpa [#allocation3], 0
    %7 = vsyncpa [#allocation4], 0
    // Predicated region
    $region2: #{tpu_custom_call.1} parent=1 // pred_check
      _
    $region3: #{tpu_custom_call.1} parent=1 // pred_check_branch
      %9 = sbr.rel (0) target = $region5
    $region4: #{tpu_custom_call.1} parent=1 // pred_region
      %s11 = ssub.s32 32768, 32768
      %12 = vsyncadd [#allocation3], %s11
      %s13 = sshll.u32 [#allocation2], 4
      %s14 = int_to_ptr.vmem [resolvable:$true] %s13
      %19 = dma.hbm_to_vmem [thread:$0]  %s0, 32768, %s14, [#allocation3], 2048, 2048, 128
    $region5: #{tpu_custom_call.1} parent=1 // pred_fallthru
      _
    // Predicated region
    $region6: #{tpu_custom_call.1} parent=1 // pred_check
      _
    $region7: #{tpu_custom_call.1} parent=1 // pred_check_branch
      %21 = sbr.rel (0) target = $region9
    $region8: #{tpu_custom_call.1} parent=1 // pred_region
      %22 = dma.done [#allocation3], 32768
    $region9: #{tpu_custom_call.1} parent=1 // pred_fallthru
      _
    %v23 = vld [vmem:[#allocation2] sm:$0xff]
    %v24 = vld [vmem:[#allocation2 + $0x8] sm:$0xff]
    %v25 = vld [vmem:[#allocation2 + $0x10] sm:$0xff]
    %v26 = vld [vmem:[#allocation2 + $0x18] sm:$0xff]
    %v27 = vld [vmem:[#allocation2 + $0x20] sm:$0xff]
    %v28 = vld [vmem:[#allocation2 + $0x28] sm:$0xff]
    %v29 = vld [vmem:[#allocation2 + $0x30] sm:$0xff]
    %v30 = vld [vmem:[#allocation2 + $0x38] sm:$0xff]
    %v31 = vld [vmem:[#allocation2 + $0x40] sm:$0xff]
    %v32 = vld [vmem:[#allocation2 + $0x48] sm:$0xff]
    %v33 = vld [vmem:[#allocation2 + $0x50] sm:$0xff]
    %v34 = vld [vmem:[#allocation2 + $0x58] sm:$0xff]
    %v35 = vld [vmem:[#allocation2 + $0x60] sm:$0xff]
    %v36 = vld [vmem:[#allocation2 + $0x68] sm:$0xff]
    %v37 = vld [vmem:[#allocation2 + $0x70] sm:$0xff]
    %v38 = vld [vmem:[#allocation2 + $0x78] sm:$0xff]
    %v39 = vld [vmem:[#allocation2 + $0x80] sm:$0xff]
    %v40 = vld [vmem:[#allocation2 + $0x88] sm:$0xff]
    %v41 = vld [vmem:[#allocation2 + $0x90] sm:$0xff]
    %v42 = vld [vmem:[#allocation2 + $0x98] sm:$0xff]
    %v43 = vld [vmem:[#allocation2 + $0xa0] sm:$0xff]
    %v44 = vld [vmem:[#allocation2 + $0xa8] sm:$0xff]
    %v45 = vld [vmem:[#allocation2 + $0xb0] sm:$0xff]
    %v46 = vld [vmem:[#allocation2 + $0xb8] sm:$0xff]
    %v47 = vld [vmem:[#allocation2 + $0xc0] sm:$0xff]
    %v48 = vld [vmem:[#allocation2 + $0xc8] sm:$0xff]
    %v49 = vld [vmem:[#allocation2 + $0xd0] sm:$0xff]
    %v50 = vld [vmem:[#allocation2 + $0xd8] sm:$0xff]
    %v51 = vld [vmem:[#allocation2 + $0xe0] sm:$0xff]
    %v52 = vld [vmem:[#allocation2 + $0xe8] sm:$0xff]
    %v53 = vld [vmem:[#allocation2 + $0xf0] sm:$0xff]
    %v54 = vld [vmem:[#allocation2 + $0xf8] sm:$0xff]
    %v55 = vld [vmem:[#allocation2 + $0x100] sm:$0xff]
    %v56 = vld [vmem:[#allocation2 + $0x108] sm:$0xff]
    %v57 = vld [vmem:[#allocation2 + $0x110] sm:$0xff]
    %v58 = vld [vmem:[#allocation2 + $0x118] sm:$0xff]
    %v59 = vld [vmem:[#allocation2 + $0x120] sm:$0xff]
    %v60 = vld [vmem:[#allocation2 + $0x128] sm:$0xff]
    %v61 = vld [vmem:[#allocation2 + $0x130] sm:$0xff]
    %v62 = vld [vmem:[#allocation2 + $0x138] sm:$0xff]
    %v63 = vld [vmem:[#allocation2 + $0x140] sm:$0xff]
    %v64 = vld [vmem:[#allocation2 + $0x148] sm:$0xff]
    %v65 = vld [vmem:[#allocation2 + $0x150] sm:$0xff]
    %v66 = vld [vmem:[#allocation2 + $0x158] sm:$0xff]
    %v67 = vld [vmem:[#allocation2 + $0x160] sm:$0xff]
    %v68 = vld [vmem:[#allocation2 + $0x168] sm:$0xff]
    %v69 = vld [vmem:[#allocation2 + $0x170] sm:$0xff]
    %v70 = vld [vmem:[#allocation2 + $0x178] sm:$0xff]
    %v71 = vld [vmem:[#allocation2 + $0x180] sm:$0xff]
    %v72 = vld [vmem:[#allocation2 + $0x188] sm:$0xff]
    %v73 = vld [vmem:[#allocation2 + $0x190] sm:$0xff]
    %v74 = vld [vmem:[#allocation2 + $0x198] sm:$0xff]
    %v75 = vld [vmem:[#allocation2 + $0x1a0] sm:$0xff]
    %v76 = vld [vmem:[#allocation2 + $0x1a8] sm:$0xff]
    %v77 = vld [vmem:[#allocation2 + $0x1b0] sm:$0xff]
    %v78 = vld [vmem:[#allocation2 + $0x1b8] sm:$0xff]
    %v79 = vld [vmem:[#allocation2 + $0x1c0] sm:$0xff]
    %v80 = vld [vmem:[#allocation2 + $0x1c8] sm:$0xff]
    %v81 = vld [vmem:[#allocation2 + $0x1d0] sm:$0xff]
    %v82 = vld [vmem:[#allocation2 + $0x1d8] sm:$0xff]
    %v83 = vld [vmem:[#allocation2 + $0x1e0] sm:$0xff]
    %v84 = vld [vmem:[#allocation2 + $0x1e8] sm:$0xff]
    %v85 = vld [vmem:[#allocation2 + $0x1f0] sm:$0xff]
    %v86 = vld [vmem:[#allocation2 + $0x1f8] sm:$0xff]
    %v87 = vld [vmem:[#allocation2 + $0x200] sm:$0xff]
    %v88 = vld [vmem:[#allocation2 + $0x208] sm:$0xff]
    %v89 = vld [vmem:[#allocation2 + $0x210] sm:$0xff]
    %v90 = vld [vmem:[#allocation2 + $0x218] sm:$0xff]
    %v91 = vld [vmem:[#allocation2 + $0x220] sm:$0xff]
    %v92 = vld [vmem:[#allocation2 + $0x228] sm:$0xff]
    %v93 = vld [vmem:[#allocation2 + $0x230] sm:$0xff]
    %v94 = vld [vmem:[#allocation2 + $0x238] sm:$0xff]
    %v95 = vld [vmem:[#allocation2 + $0x240] sm:$0xff]
    %v96 = vld [vmem:[#allocation2 + $0x248] sm:$0xff]
    %v97 = vld [vmem:[#allocation2 + $0x250] sm:$0xff]
    %v98 = vld [vmem:[#allocation2 + $0x258] sm:$0xff]
    %v99 = vld [vmem:[#allocation2 + $0x260] sm:$0xff]
    %v100 = vld [vmem:[#allocation2 + $0x268] sm:$0xff]
    %v101 = vld [vmem:[#allocation2 + $0x270] sm:$0xff]
    %v102 = vld [vmem:[#allocation2 + $0x278] sm:$0xff]
    %v103 = vld [vmem:[#allocation2 + $0x280] sm:$0xff]
    %v104 = vld [vmem:[#allocation2 + $0x288] sm:$0xff]
    %v105 = vld [vmem:[#allocation2 + $0x290] sm:$0xff]
    %v106 = vld [vmem:[#allocation2 + $0x298] sm:$0xff]
    %v107 = vld [vmem:[#allocation2 + $0x2a0] sm:$0xff]
    %v108 = vld [vmem:[#allocation2 + $0x2a8] sm:$0xff]
    %v109 = vld [vmem:[#allocation2 + $0x2b0] sm:$0xff]
    %v110 = vld [vmem:[#allocation2 + $0x2b8] sm:$0xff]
    %v111 = vld [vmem:[#allocation2 + $0x2c0] sm:$0xff]
    %v112 = vld [vmem:[#allocation2 + $0x2c8] sm:$0xff]
    %v113 = vld [vmem:[#allocation2 + $0x2d0] sm:$0xff]
    %v114 = vld [vmem:[#allocation2 + $0x2d8] sm:$0xff]
    %v115 = vld [vmem:[#allocation2 + $0x2e0] sm:$0xff]
    %v116 = vld [vmem:[#allocation2 + $0x2e8] sm:$0xff]
    %v117 = vld [vmem:[#allocation2 + $0x2f0] sm:$0xff]
    %v118 = vld [vmem:[#allocation2 + $0x2f8] sm:$0xff]
    %v119 = vld [vmem:[#allocation2 + $0x300] sm:$0xff]
    %v120 = vld [vmem:[#allocation2 + $0x308] sm:$0xff]
    %v121 = vld [vmem:[#allocation2 + $0x310] sm:$0xff]
    %v122 = vld [vmem:[#allocation2 + $0x318] sm:$0xff]
    %v123 = vld [vmem:[#allocation2 + $0x320] sm:$0xff]
    %v124 = vld [vmem:[#allocation2 + $0x328] sm:$0xff]
    %v125 = vld [vmem:[#allocation2 + $0x330] sm:$0xff]
    %v126 = vld [vmem:[#allocation2 + $0x338] sm:$0xff]
    %v127 = vld [vmem:[#allocation2 + $0x340] sm:$0xff]
    %v128 = vld [vmem:[#allocation2 + $0x348] sm:$0xff]
    %v129 = vld [vmem:[#allocation2 + $0x350] sm:$0xff]
    %v130 = vld [vmem:[#allocation2 + $0x358] sm:$0xff]
    %v131 = vld [vmem:[#allocation2 + $0x360] sm:$0xff]
    %v132 = vld [vmem:[#allocation2 + $0x368] sm:$0xff]
    %v133 = vld [vmem:[#allocation2 + $0x370] sm:$0xff]
    %v134 = vld [vmem:[#allocation2 + $0x378] sm:$0xff]
    %v135 = vld [vmem:[#allocation2 + $0x380] sm:$0xff]
    %v136 = vld [vmem:[#allocation2 + $0x388] sm:$0xff]
    %v137 = vld [vmem:[#allocation2 + $0x390] sm:$0xff]
    %v138 = vld [vmem:[#allocation2 + $0x398] sm:$0xff]
    %v139 = vld [vmem:[#allocation2 + $0x3a0] sm:$0xff]
    %v140 = vld [vmem:[#allocation2 + $0x3a8] sm:$0xff]
    %v141 = vld [vmem:[#allocation2 + $0x3b0] sm:$0xff]
    %v142 = vld [vmem:[#allocation2 + $0x3b8] sm:$0xff]
    %v143 = vld [vmem:[#allocation2 + $0x3c0] sm:$0xff]
    %v144 = vld [vmem:[#allocation2 + $0x3c8] sm:$0xff]
    %v145 = vld [vmem:[#allocation2 + $0x3d0] sm:$0xff]
    %v146 = vld [vmem:[#allocation2 + $0x3d8] sm:$0xff]
    %v147 = vld [vmem:[#allocation2 + $0x3e0] sm:$0xff]
    %v148 = vld [vmem:[#allocation2 + $0x3e8] sm:$0xff]
    %v149 = vld [vmem:[#allocation2 + $0x3f0] sm:$0xff]
    %v150 = vld [vmem:[#allocation2 + $0x3f8] sm:$0xff]
    %v151 = vld [vmem:[#allocation2 + $0x400] sm:$0xff]
    %v152 = vld [vmem:[#allocation2 + $0x408] sm:$0xff]
    %v153 = vld [vmem:[#allocation2 + $0x410] sm:$0xff]
    %v154 = vld [vmem:[#allocation2 + $0x418] sm:$0xff]
    %v155 = vld [vmem:[#allocation2 + $0x420] sm:$0xff]
    %v156 = vld [vmem:[#allocation2 + $0x428] sm:$0xff]
    %v157 = vld [vmem:[#allocation2 + $0x430] sm:$0xff]
    %v158 = vld [vmem:[#allocation2 + $0x438] sm:$0xff]
    %v159 = vld [vmem:[#allocation2 + $0x440] sm:$0xff]
    %v160 = vld [vmem:[#allocation2 + $0x448] sm:$0xff]
    %v161 = vld [vmem:[#allocation2 + $0x450] sm:$0xff]
    %v162 = vld [vmem:[#allocation2 + $0x458] sm:$0xff]
    %v163 = vld [vmem:[#allocation2 + $0x460] sm:$0xff]
    %v164 = vld [vmem:[#allocation2 + $0x468] sm:$0xff]
    %v165 = vld [vmem:[#allocation2 + $0x470] sm:$0xff]
    %v166 = vld [vmem:[#allocation2 + $0x478] sm:$0xff]
    %v167 = vld [vmem:[#allocation2 + $0x480] sm:$0xff]
    %v168 = vld [vmem:[#allocation2 + $0x488] sm:$0xff]
    %v169 = vld [vmem:[#allocation2 + $0x490] sm:$0xff]
    %v170 = vld [vmem:[#allocation2 + $0x498] sm:$0xff]
    %v171 = vld [vmem:[#allocation2 + $0x4a0] sm:$0xff]
    %v172 = vld [vmem:[#allocation2 + $0x4a8] sm:$0xff]
    %v173 = vld [vmem:[#allocation2 + $0x4b0] sm:$0xff]
    %v174 = vld [vmem:[#allocation2 + $0x4b8] sm:$0xff]
    %v175 = vld [vmem:[#allocation2 + $0x4c0] sm:$0xff]
    %v176 = vld [vmem:[#allocation2 + $0x4c8] sm:$0xff]
    %v177 = vld [vmem:[#allocation2 + $0x4d0] sm:$0xff]
    %v178 = vld [vmem:[#allocation2 + $0x4d8] sm:$0xff]
    %v179 = vld [vmem:[#allocation2 + $0x4e0] sm:$0xff]
    %v180 = vld [vmem:[#allocation2 + $0x4e8] sm:$0xff]
    %v181 = vld [vmem:[#allocation2 + $0x4f0] sm:$0xff]
    %v182 = vld [vmem:[#allocation2 + $0x4f8] sm:$0xff]
    %v183 = vld [vmem:[#allocation2 + $0x500] sm:$0xff]
    %v184 = vld [vmem:[#allocation2 + $0x508] sm:$0xff]
    %v185 = vld [vmem:[#allocation2 + $0x510] sm:$0xff]
    %v186 = vld [vmem:[#allocation2 + $0x518] sm:$0xff]
    %v187 = vld [vmem:[#allocation2 + $0x520] sm:$0xff]
    %v188 = vld [vmem:[#allocation2 + $0x528] sm:$0xff]
    %v189 = vld [vmem:[#allocation2 + $0x530] sm:$0xff]
    %v190 = vld [vmem:[#allocation2 + $0x538] sm:$0xff]
    %v191 = vld [vmem:[#allocation2 + $0x540] sm:$0xff]
    %v192 = vld [vmem:[#allocation2 + $0x548] sm:$0xff]
    %v193 = vld [vmem:[#allocation2 + $0x550] sm:$0xff]
    %v194 = vld [vmem:[#allocation2 + $0x558] sm:$0xff]
    %v195 = vld [vmem:[#allocation2 + $0x560] sm:$0xff]
    %v196 = vld [vmem:[#allocation2 + $0x568] sm:$0xff]
    %v197 = vld [vmem:[#allocation2 + $0x570] sm:$0xff]
    %v198 = vld [vmem:[#allocation2 + $0x578] sm:$0xff]
    %v199 = vld [vmem:[#allocation2 + $0x580] sm:$0xff]
    %v200 = vld [vmem:[#allocation2 + $0x588] sm:$0xff]
    %v201 = vld [vmem:[#allocation2 + $0x590] sm:$0xff]
    %v202 = vld [vmem:[#allocation2 + $0x598] sm:$0xff]
    %v203 = vld [vmem:[#allocation2 + $0x5a0] sm:$0xff]
    %v204 = vld [vmem:[#allocation2 + $0x5a8] sm:$0xff]
    %v205 = vld [vmem:[#allocation2 + $0x5b0] sm:$0xff]
    %v206 = vld [vmem:[#allocation2 + $0x5b8] sm:$0xff]
    %v207 = vld [vmem:[#allocation2 + $0x5c0] sm:$0xff]
    %v208 = vld [vmem:[#allocation2 + $0x5c8] sm:$0xff]
    %v209 = vld [vmem:[#allocation2 + $0x5d0] sm:$0xff]
    %v210 = vld [vmem:[#allocation2 + $0x5d8] sm:$0xff]
    %v211 = vld [vmem:[#allocation2 + $0x5e0] sm:$0xff]
    %v212 = vld [vmem:[#allocation2 + $0x5e8] sm:$0xff]
    %v213 = vld [vmem:[#allocation2 + $0x5f0] sm:$0xff]
    %v214 = vld [vmem:[#allocation2 + $0x5f8] sm:$0xff]
    %v215 = vld [vmem:[#allocation2 + $0x600] sm:$0xff]
    %v216 = vld [vmem:[#allocation2 + $0x608] sm:$0xff]
    %v217 = vld [vmem:[#allocation2 + $0x610] sm:$0xff]
    %v218 = vld [vmem:[#allocation2 + $0x618] sm:$0xff]
    %v219 = vld [vmem:[#allocation2 + $0x620] sm:$0xff]
    %v220 = vld [vmem:[#allocation2 + $0x628] sm:$0xff]
    %v221 = vld [vmem:[#allocation2 + $0x630] sm:$0xff]
    %v222 = vld [vmem:[#allocation2 + $0x638] sm:$0xff]
    %v223 = vld [vmem:[#allocation2 + $0x640] sm:$0xff]
    %v224 = vld [vmem:[#allocation2 + $0x648] sm:$0xff]
    %v225 = vld [vmem:[#allocation2 + $0x650] sm:$0xff]
    %v226 = vld [vmem:[#allocation2 + $0x658] sm:$0xff]
    %v227 = vld [vmem:[#allocation2 + $0x660] sm:$0xff]
    %v228 = vld [vmem:[#allocation2 + $0x668] sm:$0xff]
    %v229 = vld [vmem:[#allocation2 + $0x670] sm:$0xff]
    %v230 = vld [vmem:[#allocation2 + $0x678] sm:$0xff]
    %v231 = vld [vmem:[#allocation2 + $0x680] sm:$0xff]
    %v232 = vld [vmem:[#allocation2 + $0x688] sm:$0xff]
    %v233 = vld [vmem:[#allocation2 + $0x690] sm:$0xff]
    %v234 = vld [vmem:[#allocation2 + $0x698] sm:$0xff]
    %v235 = vld [vmem:[#allocation2 + $0x6a0] sm:$0xff]
    %v236 = vld [vmem:[#allocation2 + $0x6a8] sm:$0xff]
    %v237 = vld [vmem:[#allocation2 + $0x6b0] sm:$0xff]
    %v238 = vld [vmem:[#allocation2 + $0x6b8] sm:$0xff]
    %v239 = vld [vmem:[#allocation2 + $0x6c0] sm:$0xff]
    %v240 = vld [vmem:[#allocation2 + $0x6c8] sm:$0xff]
    %v241 = vld [vmem:[#allocation2 + $0x6d0] sm:$0xff]
    %v242 = vld [vmem:[#allocation2 + $0x6d8] sm:$0xff]
    %v243 = vld [vmem:[#allocation2 + $0x6e0] sm:$0xff]
    %v244 = vld [vmem:[#allocation2 + $0x6e8] sm:$0xff]
    %v245 = vld [vmem:[#allocation2 + $0x6f0] sm:$0xff]
    %v246 = vld [vmem:[#allocation2 + $0x6f8] sm:$0xff]
    %v247 = vld [vmem:[#allocation2 + $0x700] sm:$0xff]
    %v248 = vld [vmem:[#allocation2 + $0x708] sm:$0xff]
    %v249 = vld [vmem:[#allocation2 + $0x710] sm:$0xff]
    %v250 = vld [vmem:[#allocation2 + $0x718] sm:$0xff]
    %v251 = vld [vmem:[#allocation2 + $0x720] sm:$0xff]
    %v252 = vld [vmem:[#allocation2 + $0x728] sm:$0xff]
    %v253 = vld [vmem:[#allocation2 + $0x730] sm:$0xff]
    %v254 = vld [vmem:[#allocation2 + $0x738] sm:$0xff]
    %v255 = vld [vmem:[#allocation2 + $0x740] sm:$0xff]
    %v256 = vld [vmem:[#allocation2 + $0x748] sm:$0xff]
    %v257 = vld [vmem:[#allocation2 + $0x750] sm:$0xff]
    %v258 = vld [vmem:[#allocation2 + $0x758] sm:$0xff]
    %v259 = vld [vmem:[#allocation2 + $0x760] sm:$0xff]
    %v260 = vld [vmem:[#allocation2 + $0x768] sm:$0xff]
    %v261 = vld [vmem:[#allocation2 + $0x770] sm:$0xff]
    %v262 = vld [vmem:[#allocation2 + $0x778] sm:$0xff]
    %v263 = vld [vmem:[#allocation2 + $0x780] sm:$0xff]
    %v264 = vld [vmem:[#allocation2 + $0x788] sm:$0xff]
    %v265 = vld [vmem:[#allocation2 + $0x790] sm:$0xff]
    %v266 = vld [vmem:[#allocation2 + $0x798] sm:$0xff]
    %v267 = vld [vmem:[#allocation2 + $0x7a0] sm:$0xff]
    %v268 = vld [vmem:[#allocation2 + $0x7a8] sm:$0xff]
    %v269 = vld [vmem:[#allocation2 + $0x7b0] sm:$0xff]
    %v270 = vld [vmem:[#allocation2 + $0x7b8] sm:$0xff]
    %v271 = vld [vmem:[#allocation2 + $0x7c0] sm:$0xff]
    %v272 = vld [vmem:[#allocation2 + $0x7c8] sm:$0xff]
    %v273 = vld [vmem:[#allocation2 + $0x7d0] sm:$0xff]
    %v274 = vld [vmem:[#allocation2 + $0x7d8] sm:$0xff]
    %v275 = vld [vmem:[#allocation2 + $0x7e0] sm:$0xff]
    %v276 = vld [vmem:[#allocation2 + $0x7e8] sm:$0xff]
    %v277 = vld [vmem:[#allocation2 + $0x7f0] sm:$0xff]
    %v278 = vld [vmem:[#allocation2 + $0x7f8] sm:$0xff]
    %v279 = vmax.f32 %v23, -0.5
    %v280 = vmax.f32 %v24, -0.5
    %v281 = vmax.f32 %v25, -0.5
    %v282 = vmax.f32 %v26, -0.5
    %v283 = vmax.f32 %v27, -0.5
    %v284 = vmax.f32 %v28, -0.5
    %v285 = vmax.f32 %v29, -0.5
    %v286 = vmax.f32 %v30, -0.5
    %v287 = vmax.f32 %v31, -0.5
    %v288 = vmax.f32 %v32, -0.5
    %v289 = vmax.f32 %v33, -0.5
    %v290 = vmax.f32 %v34, -0.5
    %v291 = vmax.f32 %v35, -0.5
    %v292 = vmax.f32 %v36, -0.5
    %v293 = vmax.f32 %v37, -0.5
    %v294 = vmax.f32 %v38, -0.5
    %v295 = vmax.f32 %v39, -0.5
    %v296 = vmax.f32 %v40, -0.5
    %v297 = vmax.f32 %v41, -0.5
    %v298 = vmax.f32 %v42, -0.5
    %v299 = vmax.f32 %v43, -0.5
    %v300 = vmax.f32 %v44, -0.5
    %v301 = vmax.f32 %v45, -0.5
    %v302 = vmax.f32 %v46, -0.5
    %v303 = vmax.f32 %v47, -0.5
    %v304 = vmax.f32 %v48, -0.5
    %v305 = vmax.f32 %v49, -0.5
    %v306 = vmax.f32 %v50, -0.5
    %v307 = vmax.f32 %v51, -0.5
    %v308 = vmax.f32 %v52, -0.5
    %v309 = vmax.f32 %v53, -0.5
    %v310 = vmax.f32 %v54, -0.5
    %v311 = vmax.f32 %v55, -0.5
    %v312 = vmax.f32 %v56, -0.5
    %v313 = vmax.f32 %v57, -0.5
    %v314 = vmax.f32 %v58, -0.5
    %v315 = vmax.f32 %v59, -0.5
    %v316 = vmax.f32 %v60, -0.5
    %v317 = vmax.f32 %v61, -0.5
    %v318 = vmax.f32 %v62, -0.5
    %v319 = vmax.f32 %v63, -0.5
    %v320 = vmax.f32 %v64, -0.5
    %v321 = vmax.f32 %v65, -0.5
    %v322 = vmax.f32 %v66, -0.5
    %v323 = vmax.f32 %v67, -0.5
    %v324 = vmax.f32 %v68, -0.5
    %v325 = vmax.f32 %v69, -0.5
    %v326 = vmax.f32 %v70, -0.5
    %v327 = vmax.f32 %v71, -0.5
    %v328 = vmax.f32 %v72, -0.5
    %v329 = vmax.f32 %v73, -0.5
    %v330 = vmax.f32 %v74, -0.5
    %v331 = vmax.f32 %v75, -0.5
    %v332 = vmax.f32 %v76, -0.5
    %v333 = vmax.f32 %v77, -0.5
    %v334 = vmax.f32 %v78, -0.5
    %v335 = vmax.f32 %v79, -0.5
    %v336 = vmax.f32 %v80, -0.5
    %v337 = vmax.f32 %v81, -0.5
    %v338 = vmax.f32 %v82, -0.5
    %v339 = vmax.f32 %v83, -0.5
    %v340 = vmax.f32 %v84, -0.5
    %v341 = vmax.f32 %v85, -0.5
    %v342 = vmax.f32 %v86, -0.5
    %v343 = vmax.f32 %v87, -0.5
    %v344 = vmax.f32 %v88, -0.5
    %v345 = vmax.f32 %v89, -0.5
    %v346 = vmax.f32 %v90, -0.5
    %v347 = vmax.f32 %v91, -0.5
    %v348 = vmax.f32 %v92, -0.5
    %v349 = vmax.f32 %v93, -0.5
    %v350 = vmax.f32 %v94, -0.5
    %v351 = vmax.f32 %v95, -0.5
    %v352 = vmax.f32 %v96, -0.5
    %v353 = vmax.f32 %v97, -0.5
    %v354 = vmax.f32 %v98, -0.5
    %v355 = vmax.f32 %v99, -0.5
    %v356 = vmax.f32 %v100, -0.5
    %v357 = vmax.f32 %v101, -0.5
    %v358 = vmax.f32 %v102, -0.5
    %v359 = vmax.f32 %v103, -0.5
    %v360 = vmax.f32 %v104, -0.5
    %v361 = vmax.f32 %v105, -0.5
    %v362 = vmax.f32 %v106, -0.5
    %v363 = vmax.f32 %v107, -0.5
    %v364 = vmax.f32 %v108, -0.5
    %v365 = vmax.f32 %v109, -0.5
    %v366 = vmax.f32 %v110, -0.5
    %v367 = vmax.f32 %v111, -0.5
    %v368 = vmax.f32 %v112, -0.5
    %v369 = vmax.f32 %v113, -0.5
    %v370 = vmax.f32 %v114, -0.5
    %v371 = vmax.f32 %v115, -0.5
    %v372 = vmax.f32 %v116, -0.5
    %v373 = vmax.f32 %v117, -0.5
    %v374 = vmax.f32 %v118, -0.5
    %v375 = vmax.f32 %v119, -0.5
    %v376 = vmax.f32 %v120, -0.5
    %v377 = vmax.f32 %v121, -0.5
    %v378 = vmax.f32 %v122, -0.5
    %v379 = vmax.f32 %v123, -0.5
    %v380 = vmax.f32 %v124, -0.5
    %v381 = vmax.f32 %v125, -0.5
    %v382 = vmax.f32 %v126, -0.5
    %v383 = vmax.f32 %v127, -0.5
    %v384 = vmax.f32 %v128, -0.5
    %v385 = vmax.f32 %v129, -0.5
    %v386 = vmax.f32 %v130, -0.5
    %v387 = vmax.f32 %v131, -0.5
    %v388 = vmax.f32 %v132, -0.5
    %v389 = vmax.f32 %v133, -0.5
    %v390 = vmax.f32 %v134, -0.5
    %v391 = vmax.f32 %v135, -0.5
    %v392 = vmax.f32 %v136, -0.5
    %v393 = vmax.f32 %v137, -0.5
    %v394 = vmax.f32 %v138, -0.5
    %v395 = vmax.f32 %v139, -0.5
    %v396 = vmax.f32 %v140, -0.5
    %v397 = vmax.f32 %v141, -0.5
    %v398 = vmax.f32 %v142, -0.5
    %v399 = vmax.f32 %v143, -0.5
    %v400 = vmax.f32 %v144, -0.5
    %v401 = vmax.f32 %v145, -0.5
    %v402 = vmax.f32 %v146, -0.5
    %v403 = vmax.f32 %v147, -0.5
    %v404 = vmax.f32 %v148, -0.5
    %v405 = vmax.f32 %v149, -0.5
    %v406 = vmax.f32 %v150, -0.5
    %v407 = vmax.f32 %v151, -0.5
    %v408 = vmax.f32 %v152, -0.5
    %v409 = vmax.f32 %v153, -0.5
    %v410 = vmax.f32 %v154, -0.5
    %v411 = vmax.f32 %v155, -0.5
    %v412 = vmax.f32 %v156, -0.5
    %v413 = vmax.f32 %v157, -0.5
    %v414 = vmax.f32 %v158, -0.5
    %v415 = vmax.f32 %v159, -0.5
    %v416 = vmax.f32 %v160, -0.5
    %v417 = vmax.f32 %v161, -0.5
    %v418 = vmax.f32 %v162, -0.5
    %v419 = vmax.f32 %v163, -0.5
    %v420 = vmax.f32 %v164, -0.5
    %v421 = vmax.f32 %v165, -0.5
    %v422 = vmax.f32 %v166, -0.5
    %v423 = vmax.f32 %v167, -0.5
    %v424 = vmax.f32 %v168, -0.5
    %v425 = vmax.f32 %v169, -0.5
    %v426 = vmax.f32 %v170, -0.5
    %v427 = vmax.f32 %v171, -0.5
    %v428 = vmax.f32 %v172, -0.5
    %v429 = vmax.f32 %v173, -0.5
    %v430 = vmax.f32 %v174, -0.5
    %v431 = vmax.f32 %v175, -0.5
    %v432 = vmax.f32 %v176, -0.5
    %v433 = vmax.f32 %v177, -0.5
    %v434 = vmax.f32 %v178, -0.5
    %v435 = vmax.f32 %v179, -0.5
    %v436 = vmax.f32 %v180, -0.5
    %v437 = vmax.f32 %v181, -0.5
    %v438 = vmax.f32 %v182, -0.5
    %v439 = vmax.f32 %v183, -0.5
    %v440 = vmax.f32 %v184, -0.5
    %v441 = vmax.f32 %v185, -0.5
    %v442 = vmax.f32 %v186, -0.5
    %v443 = vmax.f32 %v187, -0.5
    %v444 = vmax.f32 %v188, -0.5
    %v445 = vmax.f32 %v189, -0.5
    %v446 = vmax.f32 %v190, -0.5
    %v447 = vmax.f32 %v191, -0.5
    %v448 = vmax.f32 %v192, -0.5
    %v449 = vmax.f32 %v193, -0.5
    %v450 = vmax.f32 %v194, -0.5
    %v451 = vmax.f32 %v195, -0.5
    %v452 = vmax.f32 %v196, -0.5
    %v453 = vmax.f32 %v197, -0.5
    %v454 = vmax.f32 %v198, -0.5
    %v455 = vmax.f32 %v199, -0.5
    %v456 = vmax.f32 %v200, -0.5
    %v457 = vmax.f32 %v201, -0.5
    %v458 = vmax.f32 %v202, -0.5
    %v459 = vmax.f32 %v203, -0.5
    %v460 = vmax.f32 %v204, -0.5
    %v461 = vmax.f32 %v205, -0.5
    %v462 = vmax.f32 %v206, -0.5
    %v463 = vmax.f32 %v207, -0.5
    %v464 = vmax.f32 %v208, -0.5
    %v465 = vmax.f32 %v209, -0.5
    %v466 = vmax.f32 %v210, -0.5
    %v467 = vmax.f32 %v211, -0.5
    %v468 = vmax.f32 %v212, -0.5
    %v469 = vmax.f32 %v213, -0.5
    %v470 = vmax.f32 %v214, -0.5
    %v471 = vmax.f32 %v215, -0.5
    %v472 = vmax.f32 %v216, -0.5
    %v473 = vmax.f32 %v217, -0.5
    %v474 = vmax.f32 %v218, -0.5
    %v475 = vmax.f32 %v219, -0.5
    %v476 = vmax.f32 %v220, -0.5
    %v477 = vmax.f32 %v221, -0.5
    %v478 = vmax.f32 %v222, -0.5
    %v479 = vmax.f32 %v223, -0.5
    %v480 = vmax.f32 %v224, -0.5
    %v481 = vmax.f32 %v225, -0.5
    %v482 = vmax.f32 %v226, -0.5
    %v483 = vmax.f32 %v227, -0.5
    %v484 = vmax.f32 %v228, -0.5
    %v485 = vmax.f32 %v229, -0.5
    %v486 = vmax.f32 %v230, -0.5
    %v487 = vmax.f32 %v231, -0.5
    %v488 = vmax.f32 %v232, -0.5
    %v489 = vmax.f32 %v233, -0.5
    %v490 = vmax.f32 %v234, -0.5
    %v491 = vmax.f32 %v235, -0.5
    %v492 = vmax.f32 %v236, -0.5
    %v493 = vmax.f32 %v237, -0.5
    %v494 = vmax.f32 %v238, -0.5
    %v495 = vmax.f32 %v239, -0.5
    %v496 = vmax.f32 %v240, -0.5
    %v497 = vmax.f32 %v241, -0.5
    %v498 = vmax.f32 %v242, -0.5
    %v499 = vmax.f32 %v243, -0.5
    %v500 = vmax.f32 %v244, -0.5
    %v501 = vmax.f32 %v245, -0.5
    %v502 = vmax.f32 %v246, -0.5
    %v503 = vmax.f32 %v247, -0.5
    %v504 = vmax.f32 %v248, -0.5
    %v505 = vmax.f32 %v249, -0.5
    %v506 = vmax.f32 %v250, -0.5
    %v507 = vmax.f32 %v251, -0.5
    %v508 = vmax.f32 %v252, -0.5
    %v509 = vmax.f32 %v253, -0.5
    %v510 = vmax.f32 %v254, -0.5
    %v511 = vmax.f32 %v255, -0.5
    %v512 = vmax.f32 %v256, -0.5
    %v513 = vmax.f32 %v257, -0.5
    %v514 = vmax.f32 %v258, -0.5
    %v515 = vmax.f32 %v259, -0.5
    %v516 = vmax.f32 %v260, -0.5
    %v517 = vmax.f32 %v261, -0.5
    %v518 = vmax.f32 %v262, -0.5
    %v519 = vmax.f32 %v263, -0.5
    %v520 = vmax.f32 %v264, -0.5
    %v521 = vmax.f32 %v265, -0.5
    %v522 = vmax.f32 %v266, -0.5
    %v523 = vmax.f32 %v267, -0.5
    %v524 = vmax.f32 %v268, -0.5
    %v525 = vmax.f32 %v269, -0.5
    %v526 = vmax.f32 %v270, -0.5
    %v527 = vmax.f32 %v271, -0.5
    %v528 = vmax.f32 %v272, -0.5
    %v529 = vmax.f32 %v273, -0.5
    %v530 = vmax.f32 %v274, -0.5
    %v531 = vmax.f32 %v275, -0.5
    %v532 = vmax.f32 %v276, -0.5
    %v533 = vmax.f32 %v277, -0.5
    %v534 = vmax.f32 %v278, -0.5
    %v535 = vmin.f32 %v279, 0.5
    %v536 = vmin.f32 %v280, 0.5
    %v537 = vmin.f32 %v281, 0.5
    %v538 = vmin.f32 %v282, 0.5
    %v539 = vmin.f32 %v283, 0.5
    %v540 = vmin.f32 %v284, 0.5
    %v541 = vmin.f32 %v285, 0.5
    %v542 = vmin.f32 %v286, 0.5
    %v543 = vmin.f32 %v287, 0.5
    %v544 = vmin.f32 %v288, 0.5
    %v545 = vmin.f32 %v289, 0.5
    %v546 = vmin.f32 %v290, 0.5
    %v547 = vmin.f32 %v291, 0.5
    %v548 = vmin.f32 %v292, 0.5
    %v549 = vmin.f32 %v293, 0.5
    %v550 = vmin.f32 %v294, 0.5
    %v551 = vmin.f32 %v295, 0.5
    %v552 = vmin.f32 %v296, 0.5
    %v553 = vmin.f32 %v297, 0.5
    %v554 = vmin.f32 %v298, 0.5
    %v555 = vmin.f32 %v299, 0.5
    %v556 = vmin.f32 %v300, 0.5
    %v557 = vmin.f32 %v301, 0.5
    %v558 = vmin.f32 %v302, 0.5
    %v559 = vmin.f32 %v303, 0.5
    %v560 = vmin.f32 %v304, 0.5
    %v561 = vmin.f32 %v305, 0.5
    %v562 = vmin.f32 %v306, 0.5
    %v563 = vmin.f32 %v307, 0.5
    %v564 = vmin.f32 %v308, 0.5
    %v565 = vmin.f32 %v309, 0.5
    %v566 = vmin.f32 %v310, 0.5
    %v567 = vmin.f32 %v311, 0.5
    %v568 = vmin.f32 %v312, 0.5
    %v569 = vmin.f32 %v313, 0.5
    %v570 = vmin.f32 %v314, 0.5
    %v571 = vmin.f32 %v315, 0.5
    %v572 = vmin.f32 %v316, 0.5
    %v573 = vmin.f32 %v317, 0.5
    %v574 = vmin.f32 %v318, 0.5
    %v575 = vmin.f32 %v319, 0.5
    %v576 = vmin.f32 %v320, 0.5
    %v577 = vmin.f32 %v321, 0.5
    %v578 = vmin.f32 %v322, 0.5
    %v579 = vmin.f32 %v323, 0.5
    %v580 = vmin.f32 %v324, 0.5
    %v581 = vmin.f32 %v325, 0.5
    %v582 = vmin.f32 %v326, 0.5
    %v583 = vmin.f32 %v327, 0.5
    %v584 = vmin.f32 %v328, 0.5
    %v585 = vmin.f32 %v329, 0.5
    %v586 = vmin.f32 %v330, 0.5
    %v587 = vmin.f32 %v331, 0.5
    %v588 = vmin.f32 %v332, 0.5
    %v589 = vmin.f32 %v333, 0.5
    %v590 = vmin.f32 %v334, 0.5
    %v591 = vmin.f32 %v335, 0.5
    %v592 = vmin.f32 %v336, 0.5
    %v593 = vmin.f32 %v337, 0.5
    %v594 = vmin.f32 %v338, 0.5
    %v595 = vmin.f32 %v339, 0.5
    %v596 = vmin.f32 %v340, 0.5
    %v597 = vmin.f32 %v341, 0.5
    %v598 = vmin.f32 %v342, 0.5
    %v599 = vmin.f32 %v343, 0.5
    %v600 = vmin.f32 %v344, 0.5
    %v601 = vmin.f32 %v345, 0.5
    %v602 = vmin.f32 %v346, 0.5
    %v603 = vmin.f32 %v347, 0.5
    %v604 = vmin.f32 %v348, 0.5
    %v605 = vmin.f32 %v349, 0.5
    %v606 = vmin.f32 %v350, 0.5
    %v607 = vmin.f32 %v351, 0.5
    %v608 = vmin.f32 %v352, 0.5
    %v609 = vmin.f32 %v353, 0.5
    %v610 = vmin.f32 %v354, 0.5
    %v611 = vmin.f32 %v355, 0.5
    %v612 = vmin.f32 %v356, 0.5
    %v613 = vmin.f32 %v357, 0.5
    %v614 = vmin.f32 %v358, 0.5
    %v615 = vmin.f32 %v359, 0.5
    %v616 = vmin.f32 %v360, 0.5
    %v617 = vmin.f32 %v361, 0.5
    %v618 = vmin.f32 %v362, 0.5
    %v619 = vmin.f32 %v363, 0.5
    %v620 = vmin.f32 %v364, 0.5
    %v621 = vmin.f32 %v365, 0.5
    %v622 = vmin.f32 %v366, 0.5
    %v623 = vmin.f32 %v367, 0.5
    %v624 = vmin.f32 %v368, 0.5
    %v625 = vmin.f32 %v369, 0.5
    %v626 = vmin.f32 %v370, 0.5
    %v627 = vmin.f32 %v371, 0.5
    %v628 = vmin.f32 %v372, 0.5
    %v629 = vmin.f32 %v373, 0.5
    %v630 = vmin.f32 %v374, 0.5
    %v631 = vmin.f32 %v375, 0.5
    %v632 = vmin.f32 %v376, 0.5
    %v633 = vmin.f32 %v377, 0.5
    %v634 = vmin.f32 %v378, 0.5
    %v635 = vmin.f32 %v379, 0.5
    %v636 = vmin.f32 %v380, 0.5
    %v637 = vmin.f32 %v381, 0.5
    %v638 = vmin.f32 %v382, 0.5
    %v639 = vmin.f32 %v383, 0.5
    %v640 = vmin.f32 %v384, 0.5
    %v641 = vmin.f32 %v385, 0.5
    %v642 = vmin.f32 %v386, 0.5
    %v643 = vmin.f32 %v387, 0.5
    %v644 = vmin.f32 %v388, 0.5
    %v645 = vmin.f32 %v389, 0.5
    %v646 = vmin.f32 %v390, 0.5
    %v647 = vmin.f32 %v391, 0.5
    %v648 = vmin.f32 %v392, 0.5
    %v649 = vmin.f32 %v393, 0.5
    %v650 = vmin.f32 %v394, 0.5
    %v651 = vmin.f32 %v395, 0.5
    %v652 = vmin.f32 %v396, 0.5
    %v653 = vmin.f32 %v397, 0.5
    %v654 = vmin.f32 %v398, 0.5
    %v655 = vmin.f32 %v399, 0.5
    %v656 = vmin.f32 %v400, 0.5
    %v657 = vmin.f32 %v401, 0.5
    %v658 = vmin.f32 %v402, 0.5
    %v659 = vmin.f32 %v403, 0.5
    %v660 = vmin.f32 %v404, 0.5
    %v661 = vmin.f32 %v405, 0.5
    %v662 = vmin.f32 %v406, 0.5
    %v663 = vmin.f32 %v407, 0.5
    %v664 = vmin.f32 %v408, 0.5
    %v665 = vmin.f32 %v409, 0.5
    %v666 = vmin.f32 %v410, 0.5
    %v667 = vmin.f32 %v411, 0.5
    %v668 = vmin.f32 %v412, 0.5
    %v669 = vmin.f32 %v413, 0.5
    %v670 = vmin.f32 %v414, 0.5
    %v671 = vmin.f32 %v415, 0.5
    %v672 = vmin.f32 %v416, 0.5
    %v673 = vmin.f32 %v417, 0.5
    %v674 = vmin.f32 %v418, 0.5
    %v675 = vmin.f32 %v419, 0.5
    %v676 = vmin.f32 %v420, 0.5
    %v677 = vmin.f32 %v421, 0.5
    %v678 = vmin.f32 %v422, 0.5
    %v679 = vmin.f32 %v423, 0.5
    %v680 = vmin.f32 %v424, 0.5
    %v681 = vmin.f32 %v425, 0.5
    %v682 = vmin.f32 %v426, 0.5
    %v683 = vmin.f32 %v427, 0.5
    %v684 = vmin.f32 %v428, 0.5
    %v685 = vmin.f32 %v429, 0.5
    %v686 = vmin.f32 %v430, 0.5
    %v687 = vmin.f32 %v431, 0.5
    %v688 = vmin.f32 %v432, 0.5
    %v689 = vmin.f32 %v433, 0.5
    %v690 = vmin.f32 %v434, 0.5
    %v691 = vmin.f32 %v435, 0.5
    %v692 = vmin.f32 %v436, 0.5
    %v693 = vmin.f32 %v437, 0.5
    %v694 = vmin.f32 %v438, 0.5
    %v695 = vmin.f32 %v439, 0.5
    %v696 = vmin.f32 %v440, 0.5
    %v697 = vmin.f32 %v441, 0.5
    %v698 = vmin.f32 %v442, 0.5
    %v699 = vmin.f32 %v443, 0.5
    %v700 = vmin.f32 %v444, 0.5
    %v701 = vmin.f32 %v445, 0.5
    %v702 = vmin.f32 %v446, 0.5
    %v703 = vmin.f32 %v447, 0.5
    %v704 = vmin.f32 %v448, 0.5
    %v705 = vmin.f32 %v449, 0.5
    %v706 = vmin.f32 %v450, 0.5
    %v707 = vmin.f32 %v451, 0.5
    %v708 = vmin.f32 %v452, 0.5
    %v709 = vmin.f32 %v453, 0.5
    %v710 = vmin.f32 %v454, 0.5
    %v711 = vmin.f32 %v455, 0.5
    %v712 = vmin.f32 %v456, 0.5
    %v713 = vmin.f32 %v457, 0.5
    %v714 = vmin.f32 %v458, 0.5
    %v715 = vmin.f32 %v459, 0.5
    %v716 = vmin.f32 %v460, 0.5
    %v717 = vmin.f32 %v461, 0.5
    %v718 = vmin.f32 %v462, 0.5
    %v719 = vmin.f32 %v463, 0.5
    %v720 = vmin.f32 %v464, 0.5
    %v721 = vmin.f32 %v465, 0.5
    %v722 = vmin.f32 %v466, 0.5
    %v723 = vmin.f32 %v467, 0.5
    %v724 = vmin.f32 %v468, 0.5
    %v725 = vmin.f32 %v469, 0.5
    %v726 = vmin.f32 %v470, 0.5
    %v727 = vmin.f32 %v471, 0.5
    %v728 = vmin.f32 %v472, 0.5
    %v729 = vmin.f32 %v473, 0.5
    %v730 = vmin.f32 %v474, 0.5
    %v731 = vmin.f32 %v475, 0.5
    %v732 = vmin.f32 %v476, 0.5
    %v733 = vmin.f32 %v477, 0.5
    %v734 = vmin.f32 %v478, 0.5
    %v735 = vmin.f32 %v479, 0.5
    %v736 = vmin.f32 %v480, 0.5
    %v737 = vmin.f32 %v481, 0.5
    %v738 = vmin.f32 %v482, 0.5
    %v739 = vmin.f32 %v483, 0.5
    %v740 = vmin.f32 %v484, 0.5
    %v741 = vmin.f32 %v485, 0.5
    %v742 = vmin.f32 %v486, 0.5
    %v743 = vmin.f32 %v487, 0.5
    %v744 = vmin.f32 %v488, 0.5
    %v745 = vmin.f32 %v489, 0.5
    %v746 = vmin.f32 %v490, 0.5
    %v747 = vmin.f32 %v491, 0.5
    %v748 = vmin.f32 %v492, 0.5
    %v749 = vmin.f32 %v493, 0.5
    %v750 = vmin.f32 %v494, 0.5
    %v751 = vmin.f32 %v495, 0.5
    %v752 = vmin.f32 %v496, 0.5
    %v753 = vmin.f32 %v497, 0.5
    %v754 = vmin.f32 %v498, 0.5
    %v755 = vmin.f32 %v499, 0.5
    %v756 = vmin.f32 %v500, 0.5
    %v757 = vmin.f32 %v501, 0.5
    %v758 = vmin.f32 %v502, 0.5
    %v759 = vmin.f32 %v503, 0.5
    %v760 = vmin.f32 %v504, 0.5
    %v761 = vmin.f32 %v505, 0.5
    %v762 = vmin.f32 %v506, 0.5
    %v763 = vmin.f32 %v507, 0.5
    %v764 = vmin.f32 %v508, 0.5
    %v765 = vmin.f32 %v509, 0.5
    %v766 = vmin.f32 %v510, 0.5
    %v767 = vmin.f32 %v511, 0.5
    %v768 = vmin.f32 %v512, 0.5
    %v769 = vmin.f32 %v513, 0.5
    %v770 = vmin.f32 %v514, 0.5
    %v771 = vmin.f32 %v515, 0.5
    %v772 = vmin.f32 %v516, 0.5
    %v773 = vmin.f32 %v517, 0.5
    %v774 = vmin.f32 %v518, 0.5
    %v775 = vmin.f32 %v519, 0.5
    %v776 = vmin.f32 %v520, 0.5
    %v777 = vmin.f32 %v521, 0.5
    %v778 = vmin.f32 %v522, 0.5
    %v779 = vmin.f32 %v523, 0.5
    %v780 = vmin.f32 %v524, 0.5
    %v781 = vmin.f32 %v525, 0.5
    %v782 = vmin.f32 %v526, 0.5
    %v783 = vmin.f32 %v527, 0.5
    %v784 = vmin.f32 %v528, 0.5
    %v785 = vmin.f32 %v529, 0.5
    %v786 = vmin.f32 %v530, 0.5
    %v787 = vmin.f32 %v531, 0.5
    %v788 = vmin.f32 %v532, 0.5
    %v789 = vmin.f32 %v533, 0.5
    %v790 = vmin.f32 %v534, 0.5
    %791 = vst [vmem:[#allocation5] sm:$0xff] %v535
    %792 = vst [vmem:[#allocation5 + $0x8] sm:$0xff] %v536
    %793 = vst [vmem:[#allocation5 + $0x10] sm:$0xff] %v537
    %794 = vst [vmem:[#allocation5 + $0x18] sm:$0xff] %v538
    %795 = vst [vmem:[#allocation5 + $0x20] sm:$0xff] %v539
    %796 = vst [vmem:[#allocation5 + $0x28] sm:$0xff] %v540
    %797 = vst [vmem:[#allocation5 + $0x30] sm:$0xff] %v541
    %798 = vst [vmem:[#allocation5 + $0x38] sm:$0xff] %v542
    %799 = vst [vmem:[#allocation5 + $0x40] sm:$0xff] %v543
    %800 = vst [vmem:[#allocation5 + $0x48] sm:$0xff] %v544
    %801 = vst [vmem:[#allocation5 + $0x50] sm:$0xff] %v545
    %802 = vst [vmem:[#allocation5 + $0x58] sm:$0xff] %v546
    %803 = vst [vmem:[#allocation5 + $0x60] sm:$0xff] %v547
    %804 = vst [vmem:[#allocation5 + $0x68] sm:$0xff] %v548
    %805 = vst [vmem:[#allocation5 + $0x70] sm:$0xff] %v549
    %806 = vst [vmem:[#allocation5 + $0x78] sm:$0xff] %v550
    %807 = vst [vmem:[#allocation5 + $0x80] sm:$0xff] %v551
    %808 = vst [vmem:[#allocation5 + $0x88] sm:$0xff] %v552
    %809 = vst [vmem:[#allocation5 + $0x90] sm:$0xff] %v553
    %810 = vst [vmem:[#allocation5 + $0x98] sm:$0xff] %v554
    %811 = vst [vmem:[#allocation5 + $0xa0] sm:$0xff] %v555
    %812 = vst [vmem:[#allocation5 + $0xa8] sm:$0xff] %v556
    %813 = vst [vmem:[#allocation5 + $0xb0] sm:$0xff] %v557
    %814 = vst [vmem:[#allocation5 + $0xb8] sm:$0xff] %v558
    %815 = vst [vmem:[#allocation5 + $0xc0] sm:$0xff] %v559
    %816 = vst [vmem:[#allocation5 + $0xc8] sm:$0xff] %v560
    %817 = vst [vmem:[#allocation5 + $0xd0] sm:$0xff] %v561
    %818 = vst [vmem:[#allocation5 + $0xd8] sm:$0xff] %v562
    %819 = vst [vmem:[#allocation5 + $0xe0] sm:$0xff] %v563
    %820 = vst [vmem:[#allocation5 + $0xe8] sm:$0xff] %v564
    %821 = vst [vmem:[#allocation5 + $0xf0] sm:$0xff] %v565
    %822 = vst [vmem:[#allocation5 + $0xf8] sm:$0xff] %v566
    %823 = vst [vmem:[#allocation5 + $0x100] sm:$0xff] %v567
    %824 = vst [vmem:[#allocation5 + $0x108] sm:$0xff] %v568
    %825 = vst [vmem:[#allocation5 + $0x110] sm:$0xff] %v569
    %826 = vst [vmem:[#allocation5 + $0x118] sm:$0xff] %v570
    %827 = vst [vmem:[#allocation5 + $0x120] sm:$0xff] %v571
    %828 = vst [vmem:[#allocation5 + $0x128] sm:$0xff] %v572
    %829 = vst [vmem:[#allocation5 + $0x130] sm:$0xff] %v573
    %830 = vst [vmem:[#allocation5 + $0x138] sm:$0xff] %v574
    %831 = vst [vmem:[#allocation5 + $0x140] sm:$0xff] %v575
    %832 = vst [vmem:[#allocation5 + $0x148] sm:$0xff] %v576
    %833 = vst [vmem:[#allocation5 + $0x150] sm:$0xff] %v577
    %834 = vst [vmem:[#allocation5 + $0x158] sm:$0xff] %v578
    %835 = vst [vmem:[#allocation5 + $0x160] sm:$0xff] %v579
    %836 = vst [vmem:[#allocation5 + $0x168] sm:$0xff] %v580
    %837 = vst [vmem:[#allocation5 + $0x170] sm:$0xff] %v581
    %838 = vst [vmem:[#allocation5 + $0x178] sm:$0xff] %v582
    %839 = vst [vmem:[#allocation5 + $0x180] sm:$0xff] %v583
    %840 = vst [vmem:[#allocation5 + $0x188] sm:$0xff] %v584
    %841 = vst [vmem:[#allocation5 + $0x190] sm:$0xff] %v585
    %842 = vst [vmem:[#allocation5 + $0x198] sm:$0xff] %v586
    %843 = vst [vmem:[#allocation5 + $0x1a0] sm:$0xff] %v587
    %844 = vst [vmem:[#allocation5 + $0x1a8] sm:$0xff] %v588
    %845 = vst [vmem:[#allocation5 + $0x1b0] sm:$0xff] %v589
    %846 = vst [vmem:[#allocation5 + $0x1b8] sm:$0xff] %v590
    %847 = vst [vmem:[#allocation5 + $0x1c0] sm:$0xff] %v591
    %848 = vst [vmem:[#allocation5 + $0x1c8] sm:$0xff] %v592
    %849 = vst [vmem:[#allocation5 + $0x1d0] sm:$0xff] %v593
    %850 = vst [vmem:[#allocation5 + $0x1d8] sm:$0xff] %v594
    %851 = vst [vmem:[#allocation5 + $0x1e0] sm:$0xff] %v595
    %852 = vst [vmem:[#allocation5 + $0x1e8] sm:$0xff] %v596
    %853 = vst [vmem:[#allocation5 + $0x1f0] sm:$0xff] %v597
    %854 = vst [vmem:[#allocation5 + $0x1f8] sm:$0xff] %v598
    %855 = vst [vmem:[#allocation5 + $0x200] sm:$0xff] %v599
    %856 = vst [vmem:[#allocation5 + $0x208] sm:$0xff] %v600
    %857 = vst [vmem:[#allocation5 + $0x210] sm:$0xff] %v601
    %858 = vst [vmem:[#allocation5 + $0x218] sm:$0xff] %v602
    %859 = vst [vmem:[#allocation5 + $0x220] sm:$0xff] %v603
    %860 = vst [vmem:[#allocation5 + $0x228] sm:$0xff] %v604
    %861 = vst [vmem:[#allocation5 + $0x230] sm:$0xff] %v605
    %862 = vst [vmem:[#allocation5 + $0x238] sm:$0xff] %v606
    %863 = vst [vmem:[#allocation5 + $0x240] sm:$0xff] %v607
    %864 = vst [vmem:[#allocation5 + $0x248] sm:$0xff] %v608
    %865 = vst [vmem:[#allocation5 + $0x250] sm:$0xff] %v609
    %866 = vst [vmem:[#allocation5 + $0x258] sm:$0xff] %v610
    %867 = vst [vmem:[#allocation5 + $0x260] sm:$0xff] %v611
    %868 = vst [vmem:[#allocation5 + $0x268] sm:$0xff] %v612
    %869 = vst [vmem:[#allocation5 + $0x270] sm:$0xff] %v613
    %870 = vst [vmem:[#allocation5 + $0x278] sm:$0xff] %v614
    %871 = vst [vmem:[#allocation5 + $0x280] sm:$0xff] %v615
    %872 = vst [vmem:[#allocation5 + $0x288] sm:$0xff] %v616
    %873 = vst [vmem:[#allocation5 + $0x290] sm:$0xff] %v617
    %874 = vst [vmem:[#allocation5 + $0x298] sm:$0xff] %v618
    %875 = vst [vmem:[#allocation5 + $0x2a0] sm:$0xff] %v619
    %876 = vst [vmem:[#allocation5 + $0x2a8] sm:$0xff] %v620
    %877 = vst [vmem:[#allocation5 + $0x2b0] sm:$0xff] %v621
    %878 = vst [vmem:[#allocation5 + $0x2b8] sm:$0xff] %v622
    %879 = vst [vmem:[#allocation5 + $0x2c0] sm:$0xff] %v623
    %880 = vst [vmem:[#allocation5 + $0x2c8] sm:$0xff] %v624
    %881 = vst [vmem:[#allocation5 + $0x2d0] sm:$0xff] %v625
    %882 = vst [vmem:[#allocation5 + $0x2d8] sm:$0xff] %v626
    %883 = vst [vmem:[#allocation5 + $0x2e0] sm:$0xff] %v627
    %884 = vst [vmem:[#allocation5 + $0x2e8] sm:$0xff] %v628
    %885 = vst [vmem:[#allocation5 + $0x2f0] sm:$0xff] %v629
    %886 = vst [vmem:[#allocation5 + $0x2f8] sm:$0xff] %v630
    %887 = vst [vmem:[#allocation5 + $0x300] sm:$0xff] %v631
    %888 = vst [vmem:[#allocation5 + $0x308] sm:$0xff] %v632
    %889 = vst [vmem:[#allocation5 + $0x310] sm:$0xff] %v633
    %890 = vst [vmem:[#allocation5 + $0x318] sm:$0xff] %v634
    %891 = vst [vmem:[#allocation5 + $0x320] sm:$0xff] %v635
    %892 = vst [vmem:[#allocation5 + $0x328] sm:$0xff] %v636
    %893 = vst [vmem:[#allocation5 + $0x330] sm:$0xff] %v637
    %894 = vst [vmem:[#allocation5 + $0x338] sm:$0xff] %v638
    %895 = vst [vmem:[#allocation5 + $0x340] sm:$0xff] %v639
    %896 = vst [vmem:[#allocation5 + $0x348] sm:$0xff] %v640
    %897 = vst [vmem:[#allocation5 + $0x350] sm:$0xff] %v641
    %898 = vst [vmem:[#allocation5 + $0x358] sm:$0xff] %v642
    %899 = vst [vmem:[#allocation5 + $0x360] sm:$0xff] %v643
    %900 = vst [vmem:[#allocation5 + $0x368] sm:$0xff] %v644
    %901 = vst [vmem:[#allocation5 + $0x370] sm:$0xff] %v645
    %902 = vst [vmem:[#allocation5 + $0x378] sm:$0xff] %v646
    %903 = vst [vmem:[#allocation5 + $0x380] sm:$0xff] %v647
    %904 = vst [vmem:[#allocation5 + $0x388] sm:$0xff] %v648
    %905 = vst [vmem:[#allocation5 + $0x390] sm:$0xff] %v649
    %906 = vst [vmem:[#allocation5 + $0x398] sm:$0xff] %v650
    %907 = vst [vmem:[#allocation5 + $0x3a0] sm:$0xff] %v651
    %908 = vst [vmem:[#allocation5 + $0x3a8] sm:$0xff] %v652
    %909 = vst [vmem:[#allocation5 + $0x3b0] sm:$0xff] %v653
    %910 = vst [vmem:[#allocation5 + $0x3b8] sm:$0xff] %v654
    %911 = vst [vmem:[#allocation5 + $0x3c0] sm:$0xff] %v655
    %912 = vst [vmem:[#allocation5 + $0x3c8] sm:$0xff] %v656
    %913 = vst [vmem:[#allocation5 + $0x3d0] sm:$0xff] %v657
    %914 = vst [vmem:[#allocation5 + $0x3d8] sm:$0xff] %v658
    %915 = vst [vmem:[#allocation5 + $0x3e0] sm:$0xff] %v659
    %916 = vst [vmem:[#allocation5 + $0x3e8] sm:$0xff] %v660
    %917 = vst [vmem:[#allocation5 + $0x3f0] sm:$0xff] %v661
    %918 = vst [vmem:[#allocation5 + $0x3f8] sm:$0xff] %v662
    %919 = vst [vmem:[#allocation5 + $0x400] sm:$0xff] %v663
    %920 = vst [vmem:[#allocation5 + $0x408] sm:$0xff] %v664
    %921 = vst [vmem:[#allocation5 + $0x410] sm:$0xff] %v665
    %922 = vst [vmem:[#allocation5 + $0x418] sm:$0xff] %v666
    %923 = vst [vmem:[#allocation5 + $0x420] sm:$0xff] %v667
    %924 = vst [vmem:[#allocation5 + $0x428] sm:$0xff] %v668
    %925 = vst [vmem:[#allocation5 + $0x430] sm:$0xff] %v669
    %926 = vst [vmem:[#allocation5 + $0x438] sm:$0xff] %v670
    %927 = vst [vmem:[#allocation5 + $0x440] sm:$0xff] %v671
    %928 = vst [vmem:[#allocation5 + $0x448] sm:$0xff] %v672
    %929 = vst [vmem:[#allocation5 + $0x450] sm:$0xff] %v673
    %930 = vst [vmem:[#allocation5 + $0x458] sm:$0xff] %v674
    %931 = vst [vmem:[#allocation5 + $0x460] sm:$0xff] %v675
    %932 = vst [vmem:[#allocation5 + $0x468] sm:$0xff] %v676
    %933 = vst [vmem:[#allocation5 + $0x470] sm:$0xff] %v677
    %934 = vst [vmem:[#allocation5 + $0x478] sm:$0xff] %v678
    %935 = vst [vmem:[#allocation5 + $0x480] sm:$0xff] %v679
    %936 = vst [vmem:[#allocation5 + $0x488] sm:$0xff] %v680
    %937 = vst [vmem:[#allocation5 + $0x490] sm:$0xff] %v681
    %938 = vst [vmem:[#allocation5 + $0x498] sm:$0xff] %v682
    %939 = vst [vmem:[#allocation5 + $0x4a0] sm:$0xff] %v683
    %940 = vst [vmem:[#allocation5 + $0x4a8] sm:$0xff] %v684
    %941 = vst [vmem:[#allocation5 + $0x4b0] sm:$0xff] %v685
    %942 = vst [vmem:[#allocation5 + $0x4b8] sm:$0xff] %v686
    %943 = vst [vmem:[#allocation5 + $0x4c0] sm:$0xff] %v687
    %944 = vst [vmem:[#allocation5 + $0x4c8] sm:$0xff] %v688
    %945 = vst [vmem:[#allocation5 + $0x4d0] sm:$0xff] %v689
    %946 = vst [vmem:[#allocation5 + $0x4d8] sm:$0xff] %v690
    %947 = vst [vmem:[#allocation5 + $0x4e0] sm:$0xff] %v691
    %948 = vst [vmem:[#allocation5 + $0x4e8] sm:$0xff] %v692
    %949 = vst [vmem:[#allocation5 + $0x4f0] sm:$0xff] %v693
    %950 = vst [vmem:[#allocation5 + $0x4f8] sm:$0xff] %v694
    %951 = vst [vmem:[#allocation5 + $0x500] sm:$0xff] %v695
    %952 = vst [vmem:[#allocation5 + $0x508] sm:$0xff] %v696
    %953 = vst [vmem:[#allocation5 + $0x510] sm:$0xff] %v697
    %954 = vst [vmem:[#allocation5 + $0x518] sm:$0xff] %v698
    %955 = vst [vmem:[#allocation5 + $0x520] sm:$0xff] %v699
    %956 = vst [vmem:[#allocation5 + $0x528] sm:$0xff] %v700
    %957 = vst [vmem:[#allocation5 + $0x530] sm:$0xff] %v701
    %958 = vst [vmem:[#allocation5 + $0x538] sm:$0xff] %v702
    %959 = vst [vmem:[#allocation5 + $0x540] sm:$0xff] %v703
    %960 = vst [vmem:[#allocation5 + $0x548] sm:$0xff] %v704
    %961 = vst [vmem:[#allocation5 + $0x550] sm:$0xff] %v705
    %962 = vst [vmem:[#allocation5 + $0x558] sm:$0xff] %v706
    %963 = vst [vmem:[#allocation5 + $0x560] sm:$0xff] %v707
    %964 = vst [vmem:[#allocation5 + $0x568] sm:$0xff] %v708
    %965 = vst [vmem:[#allocation5 + $0x570] sm:$0xff] %v709
    %966 = vst [vmem:[#allocation5 + $0x578] sm:$0xff] %v710
    %967 = vst [vmem:[#allocation5 + $0x580] sm:$0xff] %v711
    %968 = vst [vmem:[#allocation5 + $0x588] sm:$0xff] %v712
    %969 = vst [vmem:[#allocation5 + $0x590] sm:$0xff] %v713
    %970 = vst [vmem:[#allocation5 + $0x598] sm:$0xff] %v714
    %971 = vst [vmem:[#allocation5 + $0x5a0] sm:$0xff] %v715
    %972 = vst [vmem:[#allocation5 + $0x5a8] sm:$0xff] %v716
    %973 = vst [vmem:[#allocation5 + $0x5b0] sm:$0xff] %v717
    %974 = vst [vmem:[#allocation5 + $0x5b8] sm:$0xff] %v718
    %975 = vst [vmem:[#allocation5 + $0x5c0] sm:$0xff] %v719
    %976 = vst [vmem:[#allocation5 + $0x5c8] sm:$0xff] %v720
    %977 = vst [vmem:[#allocation5 + $0x5d0] sm:$0xff] %v721
    %978 = vst [vmem:[#allocation5 + $0x5d8] sm:$0xff] %v722
    %979 = vst [vmem:[#allocation5 + $0x5e0] sm:$0xff] %v723
    %980 = vst [vmem:[#allocation5 + $0x5e8] sm:$0xff] %v724
    %981 = vst [vmem:[#allocation5 + $0x5f0] sm:$0xff] %v725
    %982 = vst [vmem:[#allocation5 + $0x5f8] sm:$0xff] %v726
    %983 = vst [vmem:[#allocation5 + $0x600] sm:$0xff] %v727
    %984 = vst [vmem:[#allocation5 + $0x608] sm:$0xff] %v728
    %985 = vst [vmem:[#allocation5 + $0x610] sm:$0xff] %v729
    %986 = vst [vmem:[#allocation5 + $0x618] sm:$0xff] %v730
    %987 = vst [vmem:[#allocation5 + $0x620] sm:$0xff] %v731
    %988 = vst [vmem:[#allocation5 + $0x628] sm:$0xff] %v732
    %989 = vst [vmem:[#allocation5 + $0x630] sm:$0xff] %v733
    %990 = vst [vmem:[#allocation5 + $0x638] sm:$0xff] %v734
    %991 = vst [vmem:[#allocation5 + $0x640] sm:$0xff] %v735
    %992 = vst [vmem:[#allocation5 + $0x648] sm:$0xff] %v736
    %993 = vst [vmem:[#allocation5 + $0x650] sm:$0xff] %v737
    %994 = vst [vmem:[#allocation5 + $0x658] sm:$0xff] %v738
    %995 = vst [vmem:[#allocation5 + $0x660] sm:$0xff] %v739
    %996 = vst [vmem:[#allocation5 + $0x668] sm:$0xff] %v740
    %997 = vst [vmem:[#allocation5 + $0x670] sm:$0xff] %v741
    %998 = vst [vmem:[#allocation5 + $0x678] sm:$0xff] %v742
    %999 = vst [vmem:[#allocation5 + $0x680] sm:$0xff] %v743
    %1000 = vst [vmem:[#allocation5 + $0x688] sm:$0xff] %v744
    %1001 = vst [vmem:[#allocation5 + $0x690] sm:$0xff] %v745
    %1002 = vst [vmem:[#allocation5 + $0x698] sm:$0xff] %v746
    %1003 = vst [vmem:[#allocation5 + $0x6a0] sm:$0xff] %v747
    %1004 = vst [vmem:[#allocation5 + $0x6a8] sm:$0xff] %v748
    %1005 = vst [vmem:[#allocation5 + $0x6b0] sm:$0xff] %v749
    %1006 = vst [vmem:[#allocation5 + $0x6b8] sm:$0xff] %v750
    %1007 = vst [vmem:[#allocation5 + $0x6c0] sm:$0xff] %v751
    %1008 = vst [vmem:[#allocation5 + $0x6c8] sm:$0xff] %v752
    %1009 = vst [vmem:[#allocation5 + $0x6d0] sm:$0xff] %v753
    %1010 = vst [vmem:[#allocation5 + $0x6d8] sm:$0xff] %v754
    %1011 = vst [vmem:[#allocation5 + $0x6e0] sm:$0xff] %v755
    %1012 = vst [vmem:[#allocation5 + $0x6e8] sm:$0xff] %v756
    %1013 = vst [vmem:[#allocation5 + $0x6f0] sm:$0xff] %v757
    %1014 = vst [vmem:[#allocation5 + $0x6f8] sm:$0xff] %v758
    %1015 = vst [vmem:[#allocation5 + $0x700] sm:$0xff] %v759
    %1016 = vst [vmem:[#allocation5 + $0x708] sm:$0xff] %v760
    %1017 = vst [vmem:[#allocation5 + $0x710] sm:$0xff] %v761
    %1018 = vst [vmem:[#allocation5 + $0x718] sm:$0xff] %v762
    %1019 = vst [vmem:[#allocation5 + $0x720] sm:$0xff] %v763
    %1020 = vst [vmem:[#allocation5 + $0x728] sm:$0xff] %v764
    %1021 = vst [vmem:[#allocation5 + $0x730] sm:$0xff] %v765
    %1022 = vst [vmem:[#allocation5 + $0x738] sm:$0xff] %v766
    %1023 = vst [vmem:[#allocation5 + $0x740] sm:$0xff] %v767
    %1024 = vst [vmem:[#allocation5 + $0x748] sm:$0xff] %v768
    %1025 = vst [vmem:[#allocation5 + $0x750] sm:$0xff] %v769
    %1026 = vst [vmem:[#allocation5 + $0x758] sm:$0xff] %v770
    %1027 = vst [vmem:[#allocation5 + $0x760] sm:$0xff] %v771
    %1028 = vst [vmem:[#allocation5 + $0x768] sm:$0xff] %v772
    %1029 = vst [vmem:[#allocation5 + $0x770] sm:$0xff] %v773
    %1030 = vst [vmem:[#allocation5 + $0x778] sm:$0xff] %v774
    %1031 = vst [vmem:[#allocation5 + $0x780] sm:$0xff] %v775
    %1032 = vst [vmem:[#allocation5 + $0x788] sm:$0xff] %v776
    %1033 = vst [vmem:[#allocation5 + $0x790] sm:$0xff] %v777
    %1034 = vst [vmem:[#allocation5 + $0x798] sm:$0xff] %v778
    %1035 = vst [vmem:[#allocation5 + $0x7a0] sm:$0xff] %v779
    %1036 = vst [vmem:[#allocation5 + $0x7a8] sm:$0xff] %v780
    %1037 = vst [vmem:[#allocation5 + $0x7b0] sm:$0xff] %v781
    %1038 = vst [vmem:[#allocation5 + $0x7b8] sm:$0xff] %v782
    %1039 = vst [vmem:[#allocation5 + $0x7c0] sm:$0xff] %v783
    %1040 = vst [vmem:[#allocation5 + $0x7c8] sm:$0xff] %v784
    %1041 = vst [vmem:[#allocation5 + $0x7d0] sm:$0xff] %v785
    %1042 = vst [vmem:[#allocation5 + $0x7d8] sm:$0xff] %v786
    %1043 = vst [vmem:[#allocation5 + $0x7e0] sm:$0xff] %v787
    %1044 = vst [vmem:[#allocation5 + $0x7e8] sm:$0xff] %v788
    %1045 = vst [vmem:[#allocation5 + $0x7f0] sm:$0xff] %v789
    %1046 = vst [vmem:[#allocation5 + $0x7f8] sm:$0xff] %v790
    // Predicated region
    $region10: #{tpu_custom_call.1} parent=1 // pred_check
      _
    $region11: #{tpu_custom_call.1} parent=1 // pred_check_branch
      %1048 = sbr.rel (0) target = $region13
    $region12: #{tpu_custom_call.1} parent=1 // pred_region
      %s1050 = ssub.s32 32768, 32768
      %1051 = vsyncadd [#allocation4], %s1050
      %s1052 = sshll.u32 [#allocation5], 4
      %s1053 = int_to_ptr.vmem [resolvable:$true] %s1052
      %1058 = dma.vmem_to_hbm [thread:$0]  %s1053, 32768, %s1, [#allocation4], 2048, 2048, 128
    $region13: #{tpu_custom_call.1} parent=1 // pred_fallthru
      _
    // Predicated region
    $region14: #{tpu_custom_call.1} parent=1 // pred_check
      _
    $region15: #{tpu_custom_call.1} parent=1 // pred_check_branch
      %1060 = sbr.rel (0) target = $region17
    $region16: #{tpu_custom_call.1} parent=1 // pred_region
      %1061 = dma.done [#allocation4], 32768
    $region17: #{tpu_custom_call.1} parent=1 // pred_fallthru
      _
    %1062 = vsyncpa [#allocation3], 1
    %1063 = vsyncpa [#allocation4], 1

</llo_original>
